<compile_context>
chip_gen: v7x
topology: tpu7x:2x2x1
jax: 0.10.0
libtpu: 0.0.40
codegen_flags: <defaults>
</compile_context>

<pallas_src>
import functools

import jax
import jax.numpy as jnp
from jax.experimental import pallas as pl
from jax.experimental.pallas import tpu as pltpu

LN_EPS = 1e-5
_VMEM_LIMIT_BYTES = 32 * 1024 * 1024        # explicit: raises v5e's 16 MiB default,
                                            # safely under v7x's 64 MiB physical VMEM
_TARGET_BLOCK_BYTES = 4 * 1024 * 1024       # per-(C, tile) x block


def _choose_hw_tile(C, HW, dtype_bytes=4):
    """Lane-dense HW tile so pipelined buffers stay small on all TPU generations."""
    if HW * C * dtype_bytes <= _TARGET_BLOCK_BYTES:
        return HW                            # full extent: always a legal block shape
    lanes = (_TARGET_BLOCK_BYTES // (dtype_bytes * C)) // 128 * 128
    lanes = max(lanes, 256)                  # keep stores lane-dense / amortize step cost
    lanes = min(lanes, ((HW + 127) // 128) * 128)
    return lanes


# --------------------------------------------------------------------------------------
# Pass A: attention pooling (online softmax over HW tiles) + channel_add MLP -> y2[B,C,1]
# --------------------------------------------------------------------------------------
def _context_kernel(x_ref, wm_ref, w1_ref, b1_ref, g_ref, beta_ref, w2_ref, b2_ref,
                    y2_ref, m_sc, l_sc, acc_sc, *, hw, tile_hw):
    k = pl.program_id(1)
    nk = pl.num_programs(1)
    masked = (hw % tile_hw) != 0             # static: only emit mask ops when needed

    @pl.when(k == 0)
    def _():
        m_sc[...] = jnp.full_like(m_sc, -jnp.inf)
        l_sc[...] = jnp.zeros_like(l_sc)
        acc_sc[...] = jnp.zeros_like(acc_sc)

    x = x_ref[0]                                                    # [C, tile]  f32

    # logits = w_mask . x  — VPU broadcast-mul + cross-sublane (XLU) reduce; no MXU.
    logits = jnp.sum(x * wm_ref[...], axis=0, keepdims=True)        # [1, tile]

    if masked:
        col = jax.lax.broadcasted_iota(jnp.int32, logits.shape, 1) + k * tile_hw
        valid = col < hw
        logits_for_max = jnp.where(valid, logits, -jnp.inf)
    else:
        logits_for_max = logits

    # Online softmax update.
    m_prev = m_sc[...]                                              # (1,1)
    m_new = jnp.maximum(m_prev, jnp.max(logits_for_max, axis=-1, keepdims=True))
    alpha = jnp.exp(m_prev - m_new)
    p = jnp.exp(logits - m_new)                                     # [1, tile]
    if masked:
        p = jnp.where(valid, p, 0.0)
        xp = jnp.where(valid, x * p, 0.0)                           # guard garbage lanes
    else:
        xp = x * p
    l_sc[...] = alpha * l_sc[...] + jnp.sum(p, axis=-1, keepdims=True)
    acc_sc[...] = alpha * acc_sc[...] + jnp.sum(xp, axis=-1, keepdims=True)   # [C,1]
    m_sc[...] = m_new

    @pl.when(k == nk - 1)
    def _():
        # Runs once per batch (off the per-tile hot path): exact reciprocal and the
        # tiny jnp.dot's are negligible here.
        ctx = acc_sc[...] * pl.reciprocal(l_sc[...])                # [C,1]
        y1 = jnp.dot(w1_ref[...], ctx,
                     preferred_element_type=jnp.float32) + b1_ref[...]        # [P,1]
        mu = jnp.mean(y1)
        var = jnp.mean((y1 - mu) * (y1 - mu))                       # biased (PyTorch LN)
        y1n = (y1 - mu) * jax.lax.rsqrt(var + LN_EPS) * g_ref[...] + beta_ref[...]
        h = jnp.maximum(y1n, 0.0)
        y2 = jnp.dot(w2_ref[...], h,
                     preferred_element_type=jnp.float32) + b2_ref[...]        # [C,1]
        y2_ref[0] = y2


# --------------------------------------------------------------------------------------
# Pass B: out = x + y2 (broadcast over HW), streamed in HW tiles, fully parallel.
# --------------------------------------------------------------------------------------
def _fusion_kernel(x_ref, y2_ref, o_ref):
    o_ref[0] = x_ref[0] + y2_ref[0]          # [C, tile] + [C, 1] lane-broadcast


@jax.jit
def global_context_block(x_nchw, params):
    """x_nchw: [B, C, H, W] float32. Returns [B, C, H, W]."""
    B, C, H, W = x_nchw.shape
    HW = H * W
    x = x_nchw.reshape(B, C, HW)
    P = params["w1"].shape[0]

    tile_hw = _choose_hw_tile(C, HW)
    n_k = (HW + tile_hw - 1) // tile_hw

    wm_col = params["w_mask"].reshape(1, C).T          # [C,1] sublane layout for VPU mul
    const = lambda shape: pl.BlockSpec(shape, lambda b, k: (0, 0))   # fetched once

    # ---- pass A: context + channel_add MLP -> y2 [B, C, 1] ----
    y2 = pl.pallas_call(
        functools.partial(_context_kernel, hw=HW, tile_hw=tile_hw),
        out_shape=jax.ShapeDtypeStruct((B, C, 1), jnp.float32),
        grid_spec=pltpu.PrefetchScalarGridSpec(
            num_scalar_prefetch=0,
            grid=(B, n_k),
            in_specs=[
                pl.BlockSpec((1, C, tile_hw), lambda b, k: (b, 0, k)),   # x (streamed)
                const((C, 1)),                                           # w_mask^T
                const((P, C)),                                           # W1
                const((P, 1)),                                           # b1
                const((P, 1)),                                           # gamma
                const((P, 1)),                                           # beta
                const((C, P)),                                           # W2
                const((C, 1)),                                           # b2
            ],
            out_specs=pl.BlockSpec((1, C, 1), lambda b, k: (b, 0, 0)),
            scratch_shapes=[pltpu.VMEM((1, 1), jnp.float32),   # running max
                            pltpu.VMEM((1, 1), jnp.float32),   # running denom
                            pltpu.VMEM((C, 1), jnp.float32)],  # running weighted sum
        ),
        compiler_params=pltpu.CompilerParams(
            dimension_semantics=("parallel", "arbitrary"),
            vmem_limit_bytes=_VMEM_LIMIT_BYTES),
    )(x, wm_col, params["w1"], params["b1"], params["gamma"], params["beta"],
      params["w2"], params["b2"])

    # ---- pass B: out = x + y2, in-place over x's buffer ----
    out = pl.pallas_call(
        _fusion_kernel,
        out_shape=jax.ShapeDtypeStruct((B, C, HW), jnp.float32),
        grid_spec=pltpu.PrefetchScalarGridSpec(
            num_scalar_prefetch=0,
            grid=(B, n_k),
            in_specs=[pl.BlockSpec((1, C, tile_hw), lambda b, k: (b, 0, k)),
                      pl.BlockSpec((1, C, 1), lambda b, k: (b, 0, 0))],
            out_specs=pl.BlockSpec((1, C, tile_hw), lambda b, k: (b, 0, k)),
        ),
        input_output_aliases={0: 0},                     # reuse x's HBM buffer
        compiler_params=pltpu.CompilerParams(
            dimension_semantics=("parallel", "parallel"),
            vmem_limit_bytes=_VMEM_LIMIT_BYTES),
    )(x, y2)

    return out.reshape(B, C, H, W)


# --------------------------------------------------------------------------------------
# Pure-JAX reference matching the PyTorch forward (includes b_mask; softmax cancels it).
# --------------------------------------------------------------------------------------
def global_context_block_ref(x_nchw, params):
    B, C, H, W = x_nchw.shape
    HW = H * W
    x = x_nchw.reshape(B, C, HW)
    logits = jnp.einsum("oc,bcs->bos", params["w_mask"], x) + params["b_mask"][None]
    attn = jax.nn.softmax(logits, axis=-1)                       # [B,1,HW]
    ctx = jnp.einsum("bcs,bos->bc", x, attn)[..., None]          # [B,C,1]
    y1 = jnp.einsum("pc,bcv->bpv", params["w1"], ctx) + params["b1"][None]
    mu = jnp.mean(y1, axis=(1, 2), keepdims=True)
    var = jnp.mean((y1 - mu) ** 2, axis=(1, 2), keepdims=True)
    y1n = (y1 - mu) / jnp.sqrt(var + LN_EPS) * params["gamma"][None] + params["beta"][None]
    h = jnp.maximum(y1n, 0.0)
    y2 = jnp.einsum("cp,bpv->bcv", params["w2"], h) + params["b2"][None]
    out = x + y2
    return out.reshape(B, C, H, W)


def make_params(key, C, ratio):
    P = int(C * ratio)
    ks = jax.random.split(key, 6)
    return {
        "w_mask": 0.1 * jax.random.normal(ks[0], (1, C), jnp.float32),
        "b_mask": 0.1 * jax.random.normal(ks[1], (1, 1), jnp.float32),
        "w1": 0.1 * jax.random.normal(ks[2], (P, C), jnp.float32),
        "b1": 0.1 * jax.random.normal(ks[3], (P, 1), jnp.float32),
        "gamma": jnp.ones((P, 1), jnp.float32),     # LayerNorm default init
        "beta": jnp.zeros((P, 1), jnp.float32),
        "w2": 0.1 * jax.random.normal(ks[4], (C, P), jnp.float32),
        "b2": 0.1 * jax.random.normal(ks[5], (C, 1), jnp.float32),
    }


if __name__ == "__main__":
    key = jax.random.PRNGKey(0)
    kx, kp = jax.random.split(key)

    B, C, H, W = 2, 16, 16, 16
    ratio = 0.25                                    # planes = 4
    x = jax.random.normal(kx, (B, C, H, W), jnp.float32)
    params = make_params(kp, C, ratio)

    out = global_context_block(x, params)
    out = jax.block_until_ready(out)

    ref = global_context_block_ref(x, params)
    assert out.shape == (B, C, H, W)
    assert jnp.allclose(out, ref, atol=1e-5, rtol=1e-5), "mismatch vs reference"

    print("KERNEL_OK")
</pallas_src>

<mosaic_0001>
module attributes {stable_mosaic.version = 11 : i64} {
  func.func @_fusion_kernel(%arg0: i32, %arg1: i32, %arg2: memref<1x16x256xf32, #tpu.memory_space<vmem>>, %arg3: memref<1x16x1xf32, #tpu.memory_space<vmem>>, %arg4: memref<1x16x256xf32, #tpu.memory_space<vmem>>) attributes {dimension_semantics = [#tpu.dimension_semantics<parallel>, #tpu.dimension_semantics<parallel>], iteration_bounds = array<i64: 2, 1>, scalar_prefetch = 0 : i64, scratch_operands = 0 : i64, tpu.core_type = #tpu.core_type<tc>, window_params = [{transform_indices = @transform_0, window_bounds = array<i64: 1, 16, 256>}, {transform_indices = @transform_1, window_bounds = array<i64: 1, 16, 1>}, {transform_indices = @transform_2, window_bounds = array<i64: 1, 16, 256>}]} {
    %c0 = arith.constant 0 : index
    %c0_0 = arith.constant 0 : index
    %c0_1 = arith.constant 0 : index
    %0 = vector.load %arg2[%c0, %c0_0, %c0_1] : memref<1x16x256xf32, #tpu.memory_space<vmem>>, vector<1x16x256xf32>
    %1 = vector.shape_cast %0 : vector<1x16x256xf32> to vector<16x256xf32>
    %c0_2 = arith.constant 0 : index
    %c0_3 = arith.constant 0 : index
    %c0_4 = arith.constant 0 : index
    %2 = vector.load %arg3[%c0_2, %c0_3, %c0_4] : memref<1x16x1xf32, #tpu.memory_space<vmem>>, vector<1x16x1xf32>
    %3 = vector.shape_cast %2 : vector<1x16x1xf32> to vector<16x1xf32>
    %4 = vector.broadcast %3 : vector<16x1xf32> to vector<16x256xf32>
    %5 = arith.addf %1, %4 : vector<16x256xf32>
    %c0_5 = arith.constant 0 : index
    %c0_6 = arith.constant 0 : index
    %c0_7 = arith.constant 0 : index
    %6 = vector.load %arg4[%c0_5, %c0_6, %c0_7] : memref<1x16x256xf32, #tpu.memory_space<vmem>>, vector<1x16x256xf32>
    %7 = vector.shape_cast %6 : vector<1x16x256xf32> to vector<16x256xf32>
    %8 = vector.shape_cast %5 : vector<16x256xf32> to vector<1x16x256xf32>
    tpu.vector_store %arg4[%c0_5, %c0_6, %c0_7], %8 {strides = array<i32>} : memref<1x16x256xf32, #tpu.memory_space<vmem>>, vector<1x16x256xf32>,
    return
  }
  func.func @transform_0(%arg0: i32, %arg1: i32) -> (i32, i32, i32) {
    %c0_i32 = arith.constant 0 : i32
    %c0_i32_0 = arith.constant 0 : i32
    return %arg0, %c0_i32, %arg1 : i32, i32, i32
  }
  func.func @transform_1(%arg0: i32, %arg1: i32) -> (i32, i32, i32) {
    %c0_i32 = arith.constant 0 : i32
    %c0_i32_0 = arith.constant 0 : i32
    %c0_i32_1 = arith.constant 0 : i32
    return %arg0, %c0_i32, %c0_i32_0 : i32, i32, i32
  }
  func.func @transform_2(%arg0: i32, %arg1: i32) -> (i32, i32, i32) {
    %c0_i32 = arith.constant 0 : i32
    %c0_i32_0 = arith.constant 0 : i32
    return %arg0, %c0_i32, %arg1 : i32, i32, i32
  }
}

module attributes {stable_mosaic.version = 11 : i64} {
  func.func @_context_kernel(%arg0: i32, %arg1: i32, %arg2: memref<1x16x256xf32, #tpu.memory_space<vmem>>, %arg3: memref<16x1xf32, #tpu.memory_space<vmem>>, %arg4: memref<4x16xf32, #tpu.memory_space<vmem>>, %arg5: memref<4x1xf32, #tpu.memory_space<vmem>>, %arg6: memref<4x1xf32, #tpu.memory_space<vmem>>, %arg7: memref<4x1xf32, #tpu.memory_space<vmem>>, %arg8: memref<16x4xf32, #tpu.memory_space<vmem>>, %arg9: memref<16x1xf32, #tpu.memory_space<vmem>>, %arg10: memref<1x16x1xf32, #tpu.memory_space<vmem>>, %arg11: memref<1x1xf32, #tpu.memory_space<vmem>>, %arg12: memref<1x1xf32, #tpu.memory_space<vmem>>, %arg13: memref<16x1xf32, #tpu.memory_space<vmem>>) attributes {dimension_semantics = [#tpu.dimension_semantics<parallel>, #tpu.dimension_semantics<arbitrary>], iteration_bounds = array<i64: 2, 1>, scalar_prefetch = 0 : i64, scratch_operands = 3 : i64, tpu.core_type = #tpu.core_type<tc>, window_params = [{transform_indices = @transform_0, window_bounds = array<i64: 1, 16, 256>}, {pipeline_mode = #tpu.pipeline_mode<synchronous>, transform_indices = @transform_1, window_bounds = array<i64: 16, 1>}, {pipeline_mode = #tpu.pipeline_mode<synchronous>, transform_indices = @transform_2, window_bounds = array<i64: 4, 16>}, {pipeline_mode = #tpu.pipeline_mode<synchronous>, transform_indices = @transform_3, window_bounds = array<i64: 4, 1>}, {pipeline_mode = #tpu.pipeline_mode<synchronous>, transform_indices = @transform_4, window_bounds = array<i64: 4, 1>}, {pipeline_mode = #tpu.pipeline_mode<synchronous>, transform_indices = @transform_5, window_bounds = array<i64: 4, 1>}, {pipeline_mode = #tpu.pipeline_mode<synchronous>, transform_indices = @transform_6, window_bounds = array<i64: 16, 4>}, {pipeline_mode = #tpu.pipeline_mode<synchronous>, transform_indices = @transform_7, window_bounds = array<i64: 16, 1>}, {transform_indices = @transform_8, window_bounds = array<i64: 1, 16, 1>}]} {
    %c0_i32 = arith.constant 0 : i32
    %0 = arith.cmpi eq, %arg1, %c0_i32 : i32
    %1 = arith.extui %0 : i1 to i32
    %c0_i32_0 = arith.constant 0 : i32
    %2 = arith.cmpi ne, %1, %c0_i32_0 : i32
    scf.if %2 {
      %cst_22 = arith.constant 0xFF800000 : f32
      %38 = vector.broadcast %cst_22 : f32 to vector<1x1xf32>
      %c0_23 = arith.constant 0 : index
      %c0_24 = arith.constant 0 : index
      %39 = vector.load %arg11[%c0_23, %c0_24] : memref<1x1xf32, #tpu.memory_space<vmem>>, vector<1x1xf32>
      tpu.vector_store %arg11[%c0_23, %c0_24], %38 {strides = array<i32>} : memref<1x1xf32, #tpu.memory_space<vmem>>, vector<1x1xf32>,
      %cst_25 = arith.constant 0.000000e+00 : f32
      %40 = vector.broadcast %cst_25 : f32 to vector<1x1xf32>
      %c0_26 = arith.constant 0 : index
      %c0_27 = arith.constant 0 : index
      %41 = vector.load %arg12[%c0_26, %c0_27] : memref<1x1xf32, #tpu.memory_space<vmem>>, vector<1x1xf32>
      tpu.vector_store %arg12[%c0_26, %c0_27], %40 {strides = array<i32>} : memref<1x1xf32, #tpu.memory_space<vmem>>, vector<1x1xf32>,
      %cst_28 = arith.constant 0.000000e+00 : f32
      %42 = vector.broadcast %cst_28 : f32 to vector<16x1xf32>
      %c0_29 = arith.constant 0 : index
      %c0_30 = arith.constant 0 : index
      %43 = vector.load %arg13[%c0_29, %c0_30] : memref<16x1xf32, #tpu.memory_space<vmem>>, vector<16x1xf32>
      tpu.vector_store %arg13[%c0_29, %c0_30], %42 {strides = array<i32>} : memref<16x1xf32, #tpu.memory_space<vmem>>, vector<16x1xf32>,
    } else {
    }
    %c0 = arith.constant 0 : index
    %c0_1 = arith.constant 0 : index
    %c0_2 = arith.constant 0 : index
    %3 = vector.load %arg2[%c0, %c0_1, %c0_2] : memref<1x16x256xf32, #tpu.memory_space<vmem>>, vector<1x16x256xf32>
    %4 = vector.shape_cast %3 : vector<1x16x256xf32> to vector<16x256xf32>
    %c0_3 = arith.constant 0 : index
    %c0_4 = arith.constant 0 : index
    %5 = vector.load %arg3[%c0_3, %c0_4] : memref<16x1xf32, #tpu.memory_space<vmem>>, vector<16x1xf32>
    %6 = vector.broadcast %5 : vector<16x1xf32> to vector<16x256xf32>
    %7 = arith.mulf %4, %6 : vector<16x256xf32>
    %cst = arith.constant dense<0.000000e+00> : vector<256xf32>
    %8 = vector.multi_reduction <add>, %7, %cst [0] : vector<16x256xf32> to vector<256xf32>
    %9 = vector.shape_cast %8 : vector<256xf32> to vector<1x256xf32>
    %c0_5 = arith.constant 0 : index
    %c0_6 = arith.constant 0 : index
    %10 = vector.load %arg11[%c0_5, %c0_6] : memref<1x1xf32, #tpu.memory_space<vmem>>, vector<1x1xf32>
    %cst_7 = arith.constant dense<0xFF800000> : vector<1xf32>
    %11 = vector.multi_reduction <maximumf>, %9, %cst_7 [1] : vector<1x256xf32> to vector<1xf32>
    %12 = vector.shape_cast %11 : vector<1xf32> to vector<1x1xf32>
    %13 = arith.maximumf %10, %12 : vector<1x1xf32>
    %14 = arith.subf %10, %13 : vector<1x1xf32>
    %15 = math.exp %14 : vector<1x1xf32>
    %16 = vector.broadcast %13 : vector<1x1xf32> to vector<1x256xf32>
    %17 = arith.subf %9, %16 : vector<1x256xf32>
    %18 = math.exp %17 : vector<1x256xf32>
    %19 = vector.broadcast %18 : vector<1x256xf32> to vector<16x256xf32>
    %20 = arith.mulf %4, %19 : vector<16x256xf32>
    %c0_8 = arith.constant 0 : index
    %c0_9 = arith.constant 0 : index
    %21 = vector.load %arg12[%c0_8, %c0_9] : memref<1x1xf32, #tpu.memory_space<vmem>>, vector<1x1xf32>
    %22 = arith.mulf %15, %21 : vector<1x1xf32>
    %cst_10 = arith.constant dense<0.000000e+00> : vector<1xf32>
    %23 = vector.multi_reduction <add>, %18, %cst_10 [1] : vector<1x256xf32> to vector<1xf32>
    %24 = vector.shape_cast %23 : vector<1xf32> to vector<1x1xf32>
    %25 = arith.addf %22, %24 : vector<1x1xf32>
    %c0_11 = arith.constant 0 : index
    %c0_12 = arith.constant 0 : index
    %26 = vector.load %arg12[%c0_11, %c0_12] : memref<1x1xf32, #tpu.memory_space<vmem>>, vector<1x1xf32>
    tpu.vector_store %arg12[%c0_11, %c0_12], %25 {strides = array<i32>} : memref<1x1xf32, #tpu.memory_space<vmem>>, vector<1x1xf32>,
    %c0_13 = arith.constant 0 : index
    %c0_14 = arith.constant 0 : index
    %27 = vector.load %arg13[%c0_13, %c0_14] : memref<16x1xf32, #tpu.memory_space<vmem>>, vector<16x1xf32>
    %28 = vector.broadcast %15 : vector<1x1xf32> to vector<16x1xf32>
    %29 = arith.mulf %28, %27 : vector<16x1xf32>
    %cst_15 = arith.constant dense<0.000000e+00> : vector<16xf32>
    %30 = vector.multi_reduction <add>, %20, %cst_15 [1] : vector<16x256xf32> to vector<16xf32>
    %31 = vector.shape_cast %30 : vector<16xf32> to vector<16x1xf32>
    %32 = arith.addf %29, %31 : vector<16x1xf32>
    %c0_16 = arith.constant 0 : index
    %c0_17 = arith.constant 0 : index
    %33 = vector.load %arg13[%c0_16, %c0_17] : memref<16x1xf32, #tpu.memory_space<vmem>>, vector<16x1xf32>
    tpu.vector_store %arg13[%c0_16, %c0_17], %32 {strides = array<i32>} : memref<16x1xf32, #tpu.memory_space<vmem>>, vector<16x1xf32>,
    %c0_18 = arith.constant 0 : index
    %c0_19 = arith.constant 0 : index
    %34 = vector.load %arg11[%c0_18, %c0_19] : memref<1x1xf32, #tpu.memory_space<vmem>>, vector<1x1xf32>
    tpu.vector_store %arg11[%c0_18, %c0_19], %13 {strides = array<i32>} : memref<1x1xf32, #tpu.memory_space<vmem>>, vector<1x1xf32>,
    %c0_i32_20 = arith.constant 0 : i32
    %35 = arith.cmpi eq, %arg1, %c0_i32_20 : i32
    %36 = arith.extui %35 : i1 to i32
    %c0_i32_21 = arith.constant 0 : i32
    %37 = arith.cmpi ne, %36, %c0_i32_21 : i32
    scf.if %37 {
      %c0_22 = arith.constant 0 : index
      %c0_23 = arith.constant 0 : index
      %38 = vector.load %arg13[%c0_22, %c0_23] : memref<16x1xf32, #tpu.memory_space<vmem>>, vector<16x1xf32>
      %c0_24 = arith.constant 0 : index
      %c0_25 = arith.constant 0 : index
      %39 = vector.load %arg12[%c0_24, %c0_25] : memref<1x1xf32, #tpu.memory_space<vmem>>, vector<1x1xf32>
      %40 = tpu.reciprocal %39 : vector<1x1xf32> -> vector<1x1xf32>
      %41 = vector.broadcast %40 : vector<1x1xf32> to vector<16x1xf32>
      %42 = arith.mulf %38, %41 : vector<16x1xf32>
      %c0_26 = arith.constant 0 : index
      %c0_27 = arith.constant 0 : index
      %43 = vector.load %arg4[%c0_26, %c0_27] : memref<4x16xf32, #tpu.memory_space<vmem>>, vector<4x16xf32>
      %cst_28 = arith.constant dense<0.000000e+00> : vector<4x1xf32>
      %44 = tpu.matmul %43, %42, %cst_28 {dimension_numbers = #tpu.dot_dimension_numbers<[1], [0], [0], [1], [0, 0, 1, 1], [], []>} : vector<4x16xf32>, vector<16x1xf32>, vector<4x1xf32> -> vector<4x1xf32>
      %c0_29 = arith.constant 0 : index
      %c0_30 = arith.constant 0 : index
      %45 = vector.load %arg5[%c0_29, %c0_30] : memref<4x1xf32, #tpu.memory_space<vmem>>, vector<4x1xf32>
      %46 = arith.addf %44, %45 : vector<4x1xf32>
      %47 = vector.shape_cast %46 : vector<4x1xf32> to vector<1x4x1xf32>
      %cst_31 = arith.constant dense<0.000000e+00> : vector<1xf32>
      %48 = vector.multi_reduction <add>, %47, %cst_31 [1, 2] : vector<1x4x1xf32> to vector<1xf32>
      %49 = vector.shape_cast %48 : vector<1xf32> to vector<1x1x1xf32>
      %50 = vector.extract %49[0, 0, 0] : f32 from vector<1x1x1xf32>
      %cst_32 = arith.constant 4.000000e+00 : f32
      %51 = arith.divf %50, %cst_32 : f32
      %52 = vector.broadcast %51 : f32 to vector<4x1xf32>
      %53 = arith.subf %46, %52 : vector<4x1xf32>
      %54 = vector.broadcast %51 : f32 to vector<4x1xf32>
      %55 = arith.subf %46, %54 : vector<4x1xf32>
      %56 = arith.mulf %53, %55 : vector<4x1xf32>
      %57 = vector.shape_cast %56 : vector<4x1xf32> to vector<1x4x1xf32>
      %cst_33 = arith.constant dense<0.000000e+00> : vector<1xf32>
      %58 = vector.multi_reduction <add>, %57, %cst_33 [1, 2] : vector<1x4x1xf32> to vector<1xf32>
      %59 = vector.shape_cast %58 : vector<1xf32> to vector<1x1x1xf32>
      %60 = vector.extract %59[0, 0, 0] : f32 from vector<1x1x1xf32>
      %cst_34 = arith.constant 4.000000e+00 : f32
      %61 = arith.divf %60, %cst_34 : f32
      %62 = vector.broadcast %51 : f32 to vector<4x1xf32>
      %63 = arith.subf %46, %62 : vector<4x1xf32>
      %cst_35 = arith.constant 9.99999974E-6 : f32
      %64 = arith.addf %61, %cst_35 : f32
      %65 = math.rsqrt %64 : f32
      %66 = vector.broadcast %65 : f32 to vector<4x1xf32>
      %67 = arith.mulf %63, %66 : vector<4x1xf32>
      %c0_36 = arith.constant 0 : index
      %c0_37 = arith.constant 0 : index
      %68 = vector.load %arg6[%c0_36, %c0_37] : memref<4x1xf32, #tpu.memory_space<vmem>>, vector<4x1xf32>
      %69 = arith.mulf %67, %68 : vector<4x1xf32>
      %c0_38 = arith.constant 0 : index
      %c0_39 = arith.constant 0 : index
      %70 = vector.load %arg7[%c0_38, %c0_39] : memref<4x1xf32, #tpu.memory_space<vmem>>, vector<4x1xf32>
      %71 = arith.addf %69, %70 : vector<4x1xf32>
      %cst_40 = arith.constant 0.000000e+00 : f32
      %72 = vector.broadcast %cst_40 : f32 to vector<4x1xf32>
      %73 = arith.maximumf %71, %72 : vector<4x1xf32>
      %c0_41 = arith.constant 0 : index
      %c0_42 = arith.constant 0 : index
      %74 = vector.load %arg8[%c0_41, %c0_42] : memref<16x4xf32, #tpu.memory_space<vmem>>, vector<16x4xf32>
      %cst_43 = arith.constant dense<0.000000e+00> : vector<16x1xf32>
      %75 = tpu.matmul %74, %73, %cst_43 {dimension_numbers = #tpu.dot_dimension_numbers<[1], [0], [0], [1], [0, 0, 1, 1], [], []>} : vector<16x4xf32>, vector<4x1xf32>, vector<16x1xf32> -> vector<16x1xf32>
      %c0_44 = arith.constant 0 : index
      %c0_45 = arith.constant 0 : index
      %76 = vector.load %arg9[%c0_44, %c0_45] : memref<16x1xf32, #tpu.memory_space<vmem>>, vector<16x1xf32>
      %77 = arith.addf %75, %76 : vector<16x1xf32>
      %c0_46 = arith.constant 0 : index
      %c0_47 = arith.constant 0 : index
      %c0_48 = arith.constant 0 : index
      %78 = vector.load %arg10[%c0_46, %c0_47, %c0_48] : memref<1x16x1xf32, #tpu.memory_space<vmem>>, vector<1x16x1xf32>
      %79 = vector.shape_cast %78 : vector<1x16x1xf32> to vector<16x1xf32>
      %80 = vector.shape_cast %77 : vector<16x1xf32> to vector<1x16x1xf32>
      tpu.vector_store %arg10[%c0_46, %c0_47, %c0_48], %80 {strides = array<i32>} : memref<1x16x1xf32, #tpu.memory_space<vmem>>, vector<1x16x1xf32>,
    } else {
    }
    return
  }
  func.func @transform_0(%arg0: i32, %arg1: i32) -> (i32, i32, i32) {
    %c0_i32 = arith.constant 0 : i32
    %c0_i32_0 = arith.constant 0 : i32
    return %arg0, %c0_i32, %arg1 : i32, i32, i32
  }
  func.func @transform_1(%arg0: i32, %arg1: i32) -> (i32, i32) {
    %c0_i32 = arith.constant 0 : i32
    %c0_i32_0 = arith.constant 0 : i32
    %c0_i32_1 = arith.constant 0 : i32
    return %c0_i32, %c0_i32_0 : i32, i32
  }
  func.func @transform_2(%arg0: i32, %arg1: i32) -> (i32, i32) {
    %c0_i32 = arith.constant 0 : i32
    %c0_i32_0 = arith.constant 0 : i32
    %c0_i32_1 = arith.constant 0 : i32
    return %c0_i32, %c0_i32_0 : i32, i32
  }
  func.func @transform_3(%arg0: i32, %arg1: i32) -> (i32, i32) {
    %c0_i32 = arith.constant 0 : i32
    %c0_i32_0 = arith.constant 0 : i32
    %c0_i32_1 = arith.constant 0 : i32
    return %c0_i32, %c0_i32_0 : i32, i32
  }
  func.func @transform_4(%arg0: i32, %arg1: i32) -> (i32, i32) {
    %c0_i32 = arith.constant 0 : i32
    %c0_i32_0 = arith.constant 0 : i32
    %c0_i32_1 = arith.constant 0 : i32
    return %c0_i32, %c0_i32_0 : i32, i32
  }
  func.func @transform_5(%arg0: i32, %arg1: i32) -> (i32, i32) {
    %c0_i32 = arith.constant 0 : i32
    %c0_i32_0 = arith.constant 0 : i32
    %c0_i32_1 = arith.constant 0 : i32
    return %c0_i32, %c0_i32_0 : i32, i32
  }
  func.func @transform_6(%arg0: i32, %arg1: i32) -> (i32, i32) {
    %c0_i32 = arith.constant 0 : i32
    %c0_i32_0 = arith.constant 0 : i32
    %c0_i32_1 = arith.constant 0 : i32
    return %c0_i32, %c0_i32_0 : i32, i32
  }
  func.func @transform_7(%arg0: i32, %arg1: i32) -> (i32, i32) {
    %c0_i32 = arith.constant 0 : i32
    %c0_i32_0 = arith.constant 0 : i32
    %c0_i32_1 = arith.constant 0 : i32
    return %c0_i32, %c0_i32_0 : i32, i32
  }
  func.func @transform_8(%arg0: i32, %arg1: i32) -> (i32, i32, i32) {
    %c0_i32 = arith.constant 0 : i32
    %c0_i32_0 = arith.constant 0 : i32
    %c0_i32_1 = arith.constant 0 : i32
    return %arg0, %c0_i32, %c0_i32_0 : i32, i32, i32
  }
}

</mosaic_0001>

<llo_original>
// kernel: global_context_block.3
$region0: #{global_context_block.3}
  #allocation0 [shape = 'u32[]', space=smem, size = 0x4, offset = 0x4, fixed_abs, tag = 'smem constant byte address 0x4 - core index']
  #allocation1 [shape = 'u32[144,128]{1,0:T(1,128)}', space=vmem, size = 0x12000, scoped, tag = 'internal scratch']
  %s0 = inlined_call_operand.vmem [shape: f32[2,16,256], index: 0, kind: input, shape index: {}, may-alias: {0,2}]
  %s1 = inlined_call_operand.vmem [shape: f32[2,16,1], index: 1, kind: input, shape index: {}]
  %s2 = inlined_call_operand.vmem [shape: f32[2,16,256], index: 2, kind: output, shape index: {}, may-alias: {0,2}]
  %s3 = sld [smem:[#allocation0]]
  $region41: #{global_context_block.3} parent=0
    _
  %s5 = ssub.s32 1, %s3
  %s6 = scalar_select 0, %s5, %s3
  loop: start=0, step=1, limit=4
  $region2: #{global_context_block.3} parent=0 // loop_pre_header
    _
  $region3: #{global_context_block.3} parent=0 // loop_header
    %s8 = sphi 0, %s12
    %p9 = scmp.ge.s32.totalorder %s8, 4
    %s15 = sphi 0, %s27
    %s16 = sphi 0, %s23
    %s17 = sphi 0, %s15
    %s18 = sphi 0, %s16
    %s19 = sphi 0, %s17
    %s20 = sphi 0, %s18
    %s32 = sphi 0, %s34
    %s35 = sphi 0, %s32
    %s36 = sphi 0, %s35
    %s52 = sphi 0, %s36
    %s58 = sphi 0, %s60
    %s61 = sphi 0, %s58
    %s62 = sphi 0, %s61
    %s78 = sphi 0, %s62
    %s86 = sphi 0, %s88
    %s89 = sphi 0, %s86
    %s90 = sphi 0, %s89
    %s106 = sphi 0, %s90
  $region4: #{global_context_block.3} parent=0 // loop_header_branch
    %11 = sbr.rel (%p9) target = $region8
  $region5: #{global_context_block.3} parent=0 // loop_body
    %s13 = ssub.s32 %s8, 1
    %s14 = ssub.s32 %s8, 2
    %s21 = sadd.s32 1, %s16
    %p22 = scmp.ge.s32.totalorder %s21, 1
    %s23 = scalar_select %p22, 0, %s21
    %s24 = sadd.s32 1, %s15
    %s25 = scalar_select %p22, %s24, %s15
    %p26 = scmp.ge.s32.totalorder %s25, 2
    %s27 = scalar_select %p26, 0, %s25
    %s28 = ssub.s32 %s15, %s27
    %s29 = ssub.s32 %s16, %s23
    %s30 = sor.u32 %s28, %s29
    %p31 = scmp.eq.s32.totalorder %s30, 0
    %s33 = sadd.s32 %s32, 1
    %s34 = scalar_select %p31, %s32, %s33
    %p37 = pneg %p31
    %p38 = scmp.eq.s32.totalorder %s8, 1
    %p39 = por %p37, %p38
    %p40 = scmp.ne.s32.totalorder %s32, %s35
    %p41 = scmp.eq.s32.totalorder %s8, 0
    %p42 = por %p40, %p41
    %p43 = scmp.ne.s32.totalorder %s32, %s35
    %p44 = scmp.eq.s32.totalorder %s13, 1
    %p45 = por %p43, %p44
    %p46 = scmp.ne.s32.totalorder %s35, %s36
    %p47 = scmp.eq.s32.totalorder %s13, 0
    %p48 = por %p46, %p47
    %p49 = scmp.ne.s32.totalorder %s35, %s36
    %p50 = scmp.eq.s32.totalorder %s14, 1
    %p51 = por %p49, %p50
    %p53 = scmp.ne.s32.totalorder %s36, %s52
    %p54 = scmp.eq.s32.totalorder %s14, 0
    %p55 = por %p53, %p54
    %s56 = ssub.s32 %s15, %s27
    %p57 = scmp.eq.s32.totalorder %s56, 0
    %s59 = sadd.s32 %s58, 1
    %s60 = scalar_select %p57, %s58, %s59
    %p63 = pneg %p57
    %p64 = scmp.eq.s32.totalorder %s8, 1
    %p65 = por %p63, %p64
    %p66 = scmp.ne.s32.totalorder %s58, %s61
    %p67 = scmp.eq.s32.totalorder %s8, 0
    %p68 = por %p66, %p67
    %p69 = scmp.ne.s32.totalorder %s58, %s61
    %p70 = scmp.eq.s32.totalorder %s13, 1
    %p71 = por %p69, %p70
    %p72 = scmp.ne.s32.totalorder %s61, %s62
    %p73 = scmp.eq.s32.totalorder %s13, 0
    %p74 = por %p72, %p73
    %p75 = scmp.ne.s32.totalorder %s61, %s62
    %p76 = scmp.eq.s32.totalorder %s14, 1
    %p77 = por %p75, %p76
    %p79 = scmp.ne.s32.totalorder %s62, %s78
    %p80 = scmp.eq.s32.totalorder %s14, 0
    %p81 = por %p79, %p80
    %s82 = ssub.s32 %s15, %s27
    %s83 = ssub.s32 %s16, %s23
    %s84 = sor.u32 %s82, %s83
    %p85 = scmp.eq.s32.totalorder %s84, 0
    %s87 = sadd.s32 %s86, 1
    %s88 = scalar_select %p85, %s86, %s87
    %p91 = pneg %p85
    %p92 = scmp.eq.s32.totalorder %s8, 1
    %p93 = por %p91, %p92
    %p94 = scmp.ne.s32.totalorder %s86, %s89
    %p95 = scmp.eq.s32.totalorder %s8, 0
    %p96 = por %p94, %p95
    %p97 = scmp.ne.s32.totalorder %s86, %s89
    %p98 = scmp.eq.s32.totalorder %s13, 1
    %p99 = por %p97, %p98
    %p100 = scmp.ne.s32.totalorder %s89, %s90
    %p101 = scmp.eq.s32.totalorder %s13, 0
    %p102 = por %p100, %p101
    %p103 = scmp.ne.s32.totalorder %s89, %s90
    %p104 = scmp.eq.s32.totalorder %s14, 1
    %p105 = por %p103, %p104
    %p107 = scmp.ne.s32.totalorder %s90, %s106
    %p108 = scmp.eq.s32.totalorder %s14, 0
    %p109 = por %p107, %p108
    %p110 = scmp.le.s32.totalorder 1, %s8
    %p111 = scmp.lt.s32.totalorder %s8, 3
    %p112 = pnand %p110, %p111
    %p113 = pneg %p112
    // Predicated region
    $region9: #{global_context_block.3} parent=5 // pred_check
      _
    $region10: #{global_context_block.3} parent=5 // pred_check_branch
      %115 = sbr.rel (%p112) target = $region12
    $region11: #{global_context_block.3} parent=5 // pred_region
      %s116 = ssub.s32 %s8, 1
    $region12: #{global_context_block.3} parent=5 // pred_fallthru
      _
    %p117 = scmp.lt.s32.totalorder %s8, 2
    // Predicated region
    $region13: #{global_context_block.3} parent=5 // pred_check
      %p118 = pneg %p117
    $region14: #{global_context_block.3} parent=5 // pred_check_branch
      %120 = sbr.rel (%p118) target = $region16
    $region15: #{global_context_block.3} parent=5 // pred_region
      // Predicated region
      $region17: #{global_context_block.3} parent=15 // pred_check
        %p121 = pneg %p42
      $region18: #{global_context_block.3} parent=15 // pred_check_branch
        %123 = sbr.rel (%p121) target = $region20
      $region19: #{global_context_block.3} parent=15 // pred_region
        %s124 = smul.u32 2, %s16
        %p125 = scmp.lt.s32.totalorder %s15, 1
        %s126 = scalar_select %p125, %s15, 1
        %p127 = scmp.lt.s32.totalorder %s124, 1
        %s128 = scalar_select %p127, %s124, 1
        %s129 = smul.addr %s126, 4
        %s130 = sadd.s32 %s128, %s129
        %s131 = smul.addr %s130, 8
        %s132 = scalar_lea.vmem %s0, %s131
        %s133 = smul.u32 2, %s16
      $region20: #{global_context_block.3} parent=15 // pred_fallthru
        _
      // Predicated region
      $region21: #{global_context_block.3} parent=15 // pred_check
        %p134 = pneg %p68
      $region22: #{global_context_block.3} parent=15 // pred_check_branch
        %136 = sbr.rel (%p134) target = $region24
      $region23: #{global_context_block.3} parent=15 // pred_region
        %p137 = scmp.lt.s32.totalorder %s15, 1
        %s138 = scalar_select %p137, %s15, 1
        %s139 = smul.addr %s138, 2
        %s140 = smul.addr %s139, 8
        %s141 = scalar_lea.vmem %s1, %s140
      $region24: #{global_context_block.3} parent=15 // pred_fallthru
        _
    $region16: #{global_context_block.3} parent=5 // pred_fallthru
      _
    %p142 = scmp.le.s32.totalorder 1, %s8
    %p143 = scmp.lt.s32.totalorder %s8, 3
    %p144 = pnand %p142, %p143
    %p145 = pneg %p144
    // Predicated region
    $region25: #{global_context_block.3} parent=5 // pred_check
      _
    $region26: #{global_context_block.3} parent=5 // pred_check_branch
      %147 = sbr.rel (%p144) target = $region28
    $region27: #{global_context_block.3} parent=5 // pred_region
      %s148 = ssub.s32 %s8, 1
      %s149 = smul.u32 2, %s18
      %p150 = scmp.lt.s32.totalorder %s17, 1
      %s151 = scalar_select %p150, %s17, 1
      %p152 = scmp.lt.s32.totalorder %s149, 1
      %s153 = scalar_select %p152, %s149, 1
      %s154 = smul.addr %s151, 4
      %s155 = sadd.s32 %s153, %s154
      %s156 = smul.addr %s155, 8
      %s157 = scalar_lea.vmem %s0, %s156
      %p158 = pneg %p48
      %p159 = pneg %p45
      %p160 = scmp.lt.s32.totalorder %s17, 1
      %s161 = scalar_select %p160, %s17, 1
      %s162 = smul.addr %s161, 2
      %s163 = smul.addr %s162, 8
      %s164 = scalar_lea.vmem %s1, %s163
      %p165 = pneg %p74
      %p166 = pneg %p71
      %p167 = pneg %p102
      %p168 = pneg %p99
      %s169 = smul.u32 2, %s18
      %p170 = scmp.lt.s32.totalorder %s17, 1
      %s171 = scalar_select %p170, %s17, 1
      %p172 = scmp.lt.s32.totalorder %s169, 1
      %s173 = scalar_select %p172, %s169, 1
      %s174 = smul.addr %s171, 4
      %s175 = sadd.s32 %s173, %s174
      %s176 = smul.addr %s175, 8
      %s177 = scalar_lea.vmem %s2, %s176
      %s178 = smul.u32 2, %s18
      %p179 = scmp.lt.s32.totalorder %s17, 1
      %s180 = scalar_select %p179, %s17, 1
      %p181 = scmp.lt.s32.totalorder %s178, 1
      %s182 = scalar_select %p181, %s178, 1
      %s183 = smul.addr %s180, 4
      %s184 = sadd.s32 %s182, %s183
      %s185 = smul.addr %s184, 8
      %s186 = scalar_lea.vmem %s0, %s185
      %s187 = smul.u32 2, %s18
      %p188 = scmp.lt.s32.totalorder %s17, 1
      %s189 = scalar_select %p188, %s17, 1
      %s190 = smul.addr %s189, 2
      %s191 = smul.addr %s190, 8
      %s192 = scalar_lea.vmem %s1, %s191
      %s193 = smul.u32 2, %s18
      %p194 = scmp.lt.s32.totalorder %s17, 1
      %s195 = scalar_select %p194, %s17, 1
      %p196 = scmp.lt.s32.totalorder %s193, 1
      %s197 = scalar_select %p196, %s193, 1
      %s198 = smul.addr %s195, 4
      %s199 = sadd.s32 %s197, %s198
      %s200 = smul.addr %s199, 8
      %s201 = scalar_lea.vmem %s2, %s200
      %s202 = smul.u32 2, %s18
      %v203 = vld [vmem:[%s186] sm:$0xff]
      %v204 = vld [vmem:[%s186 + $0x8] sm:$0xff]
      %v205 = vld [vmem:[%s186 + $0x10] sm:$0xff]
      %v206 = vld [vmem:[%s186 + $0x18] sm:$0xff]
      %v207 = vld [vmem:[%s192] sm:$0xff]
      %v208 = vld [vmem:[%s192 + $0x8] sm:$0xff]
      %210 = vset.pattern.permute.xlu0 0
      %211 = vperm.xlu0 %210, %v207
      %v212 = vpop.permute.xlu0 %211
      %215 = vset.pattern.permute.xlu0 0
      %216 = vperm.xlu0 %215, %v208
      %v217 = vpop.permute.xlu0 %216
      %v219 = vadd.f32 %v203, %v212
      %v220 = vadd.f32 %v204, %v212
      %v221 = vadd.f32 %v205, %v217
      %v222 = vadd.f32 %v206, %v217
      %223 = vst [vmem:[%s201] sm:$0xff] %v219
      %224 = vst [vmem:[%s201 + $0x8] sm:$0xff] %v220
      %225 = vst [vmem:[%s201 + $0x10] sm:$0xff] %v221
      %226 = vst [vmem:[%s201 + $0x18] sm:$0xff] %v222
      %s227 = smul.u32 2, %s18
      %p228 = scmp.lt.s32.totalorder %s17, 1
      %s229 = scalar_select %p228, %s17, 1
      %p230 = scmp.lt.s32.totalorder %s227, 1
      %s231 = scalar_select %p230, %s227, 1
      %s232 = smul.addr %s229, 4
      %s233 = sadd.s32 %s231, %s232
      %s234 = smul.addr %s233, 8
      %s235 = scalar_lea.vmem %s2, %s234
      // Predicated region
      $region29: #{global_context_block.3} parent=27 // pred_check
        %p236 = pneg %p99
      $region30: #{global_context_block.3} parent=27 // pred_check_branch
        %238 = sbr.rel (%p236) target = $region32
      $region31: #{global_context_block.3} parent=27 // pred_region
        %s239 = smul.u32 2, %s18
      $region32: #{global_context_block.3} parent=27 // pred_fallthru
        _
    $region28: #{global_context_block.3} parent=5 // pred_fallthru
      _
    %p240 = scmp.le.s32.totalorder 2, %s8
    // Predicated region
    $region33: #{global_context_block.3} parent=5 // pred_check
      %p241 = pneg %p240
    $region34: #{global_context_block.3} parent=5 // pred_check_branch
      %243 = sbr.rel (%p241) target = $region36
    $region35: #{global_context_block.3} parent=5 // pred_region
      %s244 = ssub.s32 %s8, 2
      // Predicated region
      $region37: #{global_context_block.3} parent=35 // pred_check
        %p245 = pneg %p105
      $region38: #{global_context_block.3} parent=35 // pred_check_branch
        %247 = sbr.rel (%p245) target = $region40
      $region39: #{global_context_block.3} parent=35 // pred_region
        %s248 = smul.u32 2, %s20
        %p249 = scmp.lt.s32.totalorder %s19, 1
        %s250 = scalar_select %p249, %s19, 1
        %p251 = scmp.lt.s32.totalorder %s248, 1
        %s252 = scalar_select %p251, %s248, 1
        %s253 = smul.addr %s250, 4
        %s254 = sadd.s32 %s252, %s253
        %s255 = smul.addr %s254, 8
        %s256 = scalar_lea.vmem %s2, %s255
      $region40: #{global_context_block.3} parent=35 // pred_fallthru
        _
    $region36: #{global_context_block.3} parent=5 // pred_fallthru
      _
  $region6: #{global_context_block.3} parent=0 // loop_footer
    %s12 = sadd.s32 1, %s8
  $region7: #{global_context_block.3} parent=0 // loop_footer_branch
    %7 = sbr.rel target = $region3
  $region8: #{global_context_block.3} parent=0 // loop_exit
    _

// kernel: global_context_block.2
$region0: #{global_context_block.2}
  #allocation0 [shape = 'u32[]', space=smem, size = 0x4, offset = 0x4, fixed_abs, tag = 'smem constant byte address 0x4 - core index']
  #allocation1 [shape = 'u32[144,128]{1,0:T(1,128)}', space=vmem, size = 0x12000, scoped, tag = 'internal scratch']
  #allocation2 [shape = 'f32[1,1]{1,0:T(1,128)}', space=vmem, size = 0x200, scoped, tag = 'scratch operand']
  #allocation3 [shape = 'f32[1,1]{1,0:T(1,128)}', space=vmem, size = 0x200, scoped, tag = 'scratch operand']
  #allocation4 [shape = 'f32[16,1]{1,0:T(8,128)}', space=vmem, size = 0x2000, scoped, tag = 'scratch operand']
  %s0 = inlined_call_operand.vmem [shape: f32[2,16,256], index: 0, kind: input, shape index: {}]
  %s1 = inlined_call_operand.vmem [shape: f32[16,1], index: 1, kind: input, shape index: {}]
  %s2 = inlined_call_operand.vmem [shape: f32[4,16], index: 2, kind: input, shape index: {}]
  %s3 = inlined_call_operand.vmem [shape: f32[4,1], index: 3, kind: input, shape index: {}]
  %s4 = inlined_call_operand.vmem [shape: f32[4,1], index: 4, kind: input, shape index: {}]
  %s5 = inlined_call_operand.vmem [shape: f32[4,1], index: 5, kind: input, shape index: {}]
  %s6 = inlined_call_operand.vmem [shape: f32[16,4], index: 6, kind: input, shape index: {}]
  %s7 = inlined_call_operand.vmem [shape: f32[16,1], index: 7, kind: input, shape index: {}]
  %s8 = inlined_call_operand.vmem [shape: f32[2,16,1], index: 8, kind: output, shape index: {}]
  %s9 = sld [smem:[#allocation0]]
  $region73: #{global_context_block.2} parent=0
    _
  %s11 = ssub.s32 1, %s9
  %s12 = scalar_select 0, %s11, %s9
  loop: start=0, step=1, limit=4
  $region2: #{global_context_block.2} parent=0 // loop_pre_header
    _
  $region3: #{global_context_block.2} parent=0 // loop_header
    %s14 = sphi 0, %s18
    %p15 = scmp.ge.s32.totalorder %s14, 4
    %s21 = sphi 0, %s33
    %s22 = sphi 0, %s29
    %s23 = sphi 0, %s21
    %s24 = sphi 0, %s22
    %s25 = sphi 0, %s23
    %s26 = sphi 0, %s24
    %s38 = sphi 0, %s40
    %s41 = sphi 0, %s38
    %s42 = sphi 0, %s41
    %s58 = sphi 0, %s42
    %s62 = sphi 0, %s62
    %s64 = sphi 0, %s62
    %s65 = sphi 0, %s64
    %s79 = sphi 0, %s65
    %s83 = sphi 0, %s83
    %s85 = sphi 0, %s83
    %s86 = sphi 0, %s85
    %s100 = sphi 0, %s86
    %s104 = sphi 0, %s104
    %s106 = sphi 0, %s104
    %s107 = sphi 0, %s106
    %s121 = sphi 0, %s107
    %s125 = sphi 0, %s125
    %s127 = sphi 0, %s125
    %s128 = sphi 0, %s127
    %s142 = sphi 0, %s128
    %s146 = sphi 0, %s146
    %s148 = sphi 0, %s146
    %s149 = sphi 0, %s148
    %s163 = sphi 0, %s149
    %s167 = sphi 0, %s167
    %s169 = sphi 0, %s167
    %s170 = sphi 0, %s169
    %s184 = sphi 0, %s170
    %s188 = sphi 0, %s188
    %s190 = sphi 0, %s188
    %s191 = sphi 0, %s190
    %s205 = sphi 0, %s191
    %s211 = sphi 0, %s213
    %s214 = sphi 0, %s211
    %s215 = sphi 0, %s214
    %s231 = sphi 0, %s215
  $region4: #{global_context_block.2} parent=0 // loop_header_branch
    %17 = sbr.rel (%p15) target = $region8
  $region5: #{global_context_block.2} parent=0 // loop_body
    %s19 = ssub.s32 %s14, 1
    %s20 = ssub.s32 %s14, 2
    %s27 = sadd.s32 1, %s22
    %p28 = scmp.ge.s32.totalorder %s27, 1
    %s29 = scalar_select %p28, 0, %s27
    %s30 = sadd.s32 1, %s21
    %s31 = scalar_select %p28, %s30, %s21
    %p32 = scmp.ge.s32.totalorder %s31, 2
    %s33 = scalar_select %p32, 0, %s31
    %s34 = ssub.s32 %s21, %s33
    %s35 = ssub.s32 %s22, %s29
    %s36 = sor.u32 %s34, %s35
    %p37 = scmp.eq.s32.totalorder %s36, 0
    %s39 = sadd.s32 %s38, 1
    %s40 = scalar_select %p37, %s38, %s39
    %p43 = pneg %p37
    %p44 = scmp.eq.s32.totalorder %s14, 1
    %p45 = por %p43, %p44
    %p46 = scmp.ne.s32.totalorder %s38, %s41
    %p47 = scmp.eq.s32.totalorder %s14, 0
    %p48 = por %p46, %p47
    %p49 = scmp.ne.s32.totalorder %s38, %s41
    %p50 = scmp.eq.s32.totalorder %s19, 1
    %p51 = por %p49, %p50
    %p52 = scmp.ne.s32.totalorder %s41, %s42
    %p53 = scmp.eq.s32.totalorder %s19, 0
    %p54 = por %p52, %p53
    %p55 = scmp.ne.s32.totalorder %s41, %s42
    %p56 = scmp.eq.s32.totalorder %s20, 1
    %p57 = por %p55, %p56
    %p59 = scmp.ne.s32.totalorder %s42, %s58
    %p60 = scmp.eq.s32.totalorder %s20, 0
    %p61 = por %p59, %p60
    %s63 = sadd.s32 %s62, 1
    %p66 = scmp.eq.s32.totalorder %s14, 1
    %p67 = scmp.ne.s32.totalorder %s62, %s64
    %p68 = scmp.eq.s32.totalorder %s14, 0
    %p69 = por %p67, %p68
    %p70 = scmp.ne.s32.totalorder %s62, %s64
    %p71 = scmp.eq.s32.totalorder %s19, 1
    %p72 = por %p70, %p71
    %p73 = scmp.ne.s32.totalorder %s64, %s65
    %p74 = scmp.eq.s32.totalorder %s19, 0
    %p75 = por %p73, %p74
    %p76 = scmp.ne.s32.totalorder %s64, %s65
    %p77 = scmp.eq.s32.totalorder %s20, 1
    %p78 = por %p76, %p77
    %p80 = scmp.ne.s32.totalorder %s65, %s79
    %p81 = scmp.eq.s32.totalorder %s20, 0
    %p82 = por %p80, %p81
    %s84 = sadd.s32 %s83, 1
    %p87 = scmp.eq.s32.totalorder %s14, 1
    %p88 = scmp.ne.s32.totalorder %s83, %s85
    %p89 = scmp.eq.s32.totalorder %s14, 0
    %p90 = por %p88, %p89
    %p91 = scmp.ne.s32.totalorder %s83, %s85
    %p92 = scmp.eq.s32.totalorder %s19, 1
    %p93 = por %p91, %p92
    %p94 = scmp.ne.s32.totalorder %s85, %s86
    %p95 = scmp.eq.s32.totalorder %s19, 0
    %p96 = por %p94, %p95
    %p97 = scmp.ne.s32.totalorder %s85, %s86
    %p98 = scmp.eq.s32.totalorder %s20, 1
    %p99 = por %p97, %p98
    %p101 = scmp.ne.s32.totalorder %s86, %s100
    %p102 = scmp.eq.s32.totalorder %s20, 0
    %p103 = por %p101, %p102
    %s105 = sadd.s32 %s104, 1
    %p108 = scmp.eq.s32.totalorder %s14, 1
    %p109 = scmp.ne.s32.totalorder %s104, %s106
    %p110 = scmp.eq.s32.totalorder %s14, 0
    %p111 = por %p109, %p110
    %p112 = scmp.ne.s32.totalorder %s104, %s106
    %p113 = scmp.eq.s32.totalorder %s19, 1
    %p114 = por %p112, %p113
    %p115 = scmp.ne.s32.totalorder %s106, %s107
    %p116 = scmp.eq.s32.totalorder %s19, 0
    %p117 = por %p115, %p116
    %p118 = scmp.ne.s32.totalorder %s106, %s107
    %p119 = scmp.eq.s32.totalorder %s20, 1
    %p120 = por %p118, %p119
    %p122 = scmp.ne.s32.totalorder %s107, %s121
    %p123 = scmp.eq.s32.totalorder %s20, 0
    %p124 = por %p122, %p123
    %s126 = sadd.s32 %s125, 1
    %p129 = scmp.eq.s32.totalorder %s14, 1
    %p130 = scmp.ne.s32.totalorder %s125, %s127
    %p131 = scmp.eq.s32.totalorder %s14, 0
    %p132 = por %p130, %p131
    %p133 = scmp.ne.s32.totalorder %s125, %s127
    %p134 = scmp.eq.s32.totalorder %s19, 1
    %p135 = por %p133, %p134
    %p136 = scmp.ne.s32.totalorder %s127, %s128
    %p137 = scmp.eq.s32.totalorder %s19, 0
    %p138 = por %p136, %p137
    %p139 = scmp.ne.s32.totalorder %s127, %s128
    %p140 = scmp.eq.s32.totalorder %s20, 1
    %p141 = por %p139, %p140
    %p143 = scmp.ne.s32.totalorder %s128, %s142
    %p144 = scmp.eq.s32.totalorder %s20, 0
    %p145 = por %p143, %p144
    %s147 = sadd.s32 %s146, 1
    %p150 = scmp.eq.s32.totalorder %s14, 1
    %p151 = scmp.ne.s32.totalorder %s146, %s148
    %p152 = scmp.eq.s32.totalorder %s14, 0
    %p153 = por %p151, %p152
    %p154 = scmp.ne.s32.totalorder %s146, %s148
    %p155 = scmp.eq.s32.totalorder %s19, 1
    %p156 = por %p154, %p155
    %p157 = scmp.ne.s32.totalorder %s148, %s149
    %p158 = scmp.eq.s32.totalorder %s19, 0
    %p159 = por %p157, %p158
    %p160 = scmp.ne.s32.totalorder %s148, %s149
    %p161 = scmp.eq.s32.totalorder %s20, 1
    %p162 = por %p160, %p161
    %p164 = scmp.ne.s32.totalorder %s149, %s163
    %p165 = scmp.eq.s32.totalorder %s20, 0
    %p166 = por %p164, %p165
    %s168 = sadd.s32 %s167, 1
    %p171 = scmp.eq.s32.totalorder %s14, 1
    %p172 = scmp.ne.s32.totalorder %s167, %s169
    %p173 = scmp.eq.s32.totalorder %s14, 0
    %p174 = por %p172, %p173
    %p175 = scmp.ne.s32.totalorder %s167, %s169
    %p176 = scmp.eq.s32.totalorder %s19, 1
    %p177 = por %p175, %p176
    %p178 = scmp.ne.s32.totalorder %s169, %s170
    %p179 = scmp.eq.s32.totalorder %s19, 0
    %p180 = por %p178, %p179
    %p181 = scmp.ne.s32.totalorder %s169, %s170
    %p182 = scmp.eq.s32.totalorder %s20, 1
    %p183 = por %p181, %p182
    %p185 = scmp.ne.s32.totalorder %s170, %s184
    %p186 = scmp.eq.s32.totalorder %s20, 0
    %p187 = por %p185, %p186
    %s189 = sadd.s32 %s188, 1
    %p192 = scmp.eq.s32.totalorder %s14, 1
    %p193 = scmp.ne.s32.totalorder %s188, %s190
    %p194 = scmp.eq.s32.totalorder %s14, 0
    %p195 = por %p193, %p194
    %p196 = scmp.ne.s32.totalorder %s188, %s190
    %p197 = scmp.eq.s32.totalorder %s19, 1
    %p198 = por %p196, %p197
    %p199 = scmp.ne.s32.totalorder %s190, %s191
    %p200 = scmp.eq.s32.totalorder %s19, 0
    %p201 = por %p199, %p200
    %p202 = scmp.ne.s32.totalorder %s190, %s191
    %p203 = scmp.eq.s32.totalorder %s20, 1
    %p204 = por %p202, %p203
    %p206 = scmp.ne.s32.totalorder %s191, %s205
    %p207 = scmp.eq.s32.totalorder %s20, 0
    %p208 = por %p206, %p207
    %s209 = ssub.s32 %s21, %s33
    %p210 = scmp.eq.s32.totalorder %s209, 0
    %s212 = sadd.s32 %s211, 1
    %s213 = scalar_select %p210, %s211, %s212
    %p216 = pneg %p210
    %p217 = scmp.eq.s32.totalorder %s14, 1
    %p218 = por %p216, %p217
    %p219 = scmp.ne.s32.totalorder %s211, %s214
    %p220 = scmp.eq.s32.totalorder %s14, 0
    %p221 = por %p219, %p220
    %p222 = scmp.ne.s32.totalorder %s211, %s214
    %p223 = scmp.eq.s32.totalorder %s19, 1
    %p224 = por %p222, %p223
    %p225 = scmp.ne.s32.totalorder %s214, %s215
    %p226 = scmp.eq.s32.totalorder %s19, 0
    %p227 = por %p225, %p226
    %p228 = scmp.ne.s32.totalorder %s214, %s215
    %p229 = scmp.eq.s32.totalorder %s20, 1
    %p230 = por %p228, %p229
    %p232 = scmp.ne.s32.totalorder %s215, %s231
    %p233 = scmp.eq.s32.totalorder %s20, 0
    %p234 = por %p232, %p233
    %p235 = scmp.le.s32.totalorder 1, %s14
    %p236 = scmp.lt.s32.totalorder %s14, 3
    %p237 = pnand %p235, %p236
    %p238 = pneg %p237
    // Predicated region
    $region9: #{global_context_block.2} parent=5 // pred_check
      _
    $region10: #{global_context_block.2} parent=5 // pred_check_branch
      %240 = sbr.rel (%p237) target = $region12
    $region11: #{global_context_block.2} parent=5 // pred_region
      %s241 = ssub.s32 %s14, 1
      // Predicated region
      $region13: #{global_context_block.2} parent=11 // pred_check
        %p242 = pneg %p75
      $region14: #{global_context_block.2} parent=11 // pred_check_branch
        %244 = sbr.rel (%p242) target = $region16
      $region15: #{global_context_block.2} parent=11 // pred_region
        _
      $region16: #{global_context_block.2} parent=11 // pred_fallthru
        _
      // Predicated region
      $region17: #{global_context_block.2} parent=11 // pred_check
        %p245 = pneg %p96
      $region18: #{global_context_block.2} parent=11 // pred_check_branch
        %247 = sbr.rel (%p245) target = $region20
      $region19: #{global_context_block.2} parent=11 // pred_region
        _
      $region20: #{global_context_block.2} parent=11 // pred_fallthru
        _
      // Predicated region
      $region21: #{global_context_block.2} parent=11 // pred_check
        %p248 = pneg %p117
      $region22: #{global_context_block.2} parent=11 // pred_check_branch
        %250 = sbr.rel (%p248) target = $region24
      $region23: #{global_context_block.2} parent=11 // pred_region
        _
      $region24: #{global_context_block.2} parent=11 // pred_fallthru
        _
      // Predicated region
      $region25: #{global_context_block.2} parent=11 // pred_check
        %p251 = pneg %p138
      $region26: #{global_context_block.2} parent=11 // pred_check_branch
        %253 = sbr.rel (%p251) target = $region28
      $region27: #{global_context_block.2} parent=11 // pred_region
        _
      $region28: #{global_context_block.2} parent=11 // pred_fallthru
        _
      // Predicated region
      $region29: #{global_context_block.2} parent=11 // pred_check
        %p254 = pneg %p159
      $region30: #{global_context_block.2} parent=11 // pred_check_branch
        %256 = sbr.rel (%p254) target = $region32
      $region31: #{global_context_block.2} parent=11 // pred_region
        _
      $region32: #{global_context_block.2} parent=11 // pred_fallthru
        _
      // Predicated region
      $region33: #{global_context_block.2} parent=11 // pred_check
        %p257 = pneg %p180
      $region34: #{global_context_block.2} parent=11 // pred_check_branch
        %259 = sbr.rel (%p257) target = $region36
      $region35: #{global_context_block.2} parent=11 // pred_region
        _
      $region36: #{global_context_block.2} parent=11 // pred_fallthru
        _
      // Predicated region
      $region37: #{global_context_block.2} parent=11 // pred_check
        %p260 = pneg %p201
      $region38: #{global_context_block.2} parent=11 // pred_check_branch
        %262 = sbr.rel (%p260) target = $region40
      $region39: #{global_context_block.2} parent=11 // pred_region
        _
      $region40: #{global_context_block.2} parent=11 // pred_fallthru
        _
    $region12: #{global_context_block.2} parent=5 // pred_fallthru
      _
    %p263 = scmp.lt.s32.totalorder %s14, 2
    // Predicated region
    $region41: #{global_context_block.2} parent=5 // pred_check
      %p264 = pneg %p263
    $region42: #{global_context_block.2} parent=5 // pred_check_branch
      %266 = sbr.rel (%p264) target = $region44
    $region43: #{global_context_block.2} parent=5 // pred_region
      // Predicated region
      $region45: #{global_context_block.2} parent=43 // pred_check
        %p267 = pneg %p48
      $region46: #{global_context_block.2} parent=43 // pred_check_branch
        %269 = sbr.rel (%p267) target = $region48
      $region47: #{global_context_block.2} parent=43 // pred_region
        %s270 = smul.u32 2, %s22
        %p271 = scmp.lt.s32.totalorder %s21, 1
        %s272 = scalar_select %p271, %s21, 1
        %p273 = scmp.lt.s32.totalorder %s270, 1
        %s274 = scalar_select %p273, %s270, 1
        %s275 = smul.addr %s272, 4
        %s276 = sadd.s32 %s274, %s275
        %s277 = smul.addr %s276, 8
        %s278 = scalar_lea.vmem %s0, %s277
        %s279 = smul.u32 2, %s22
      $region48: #{global_context_block.2} parent=43 // pred_fallthru
        _
    $region44: #{global_context_block.2} parent=5 // pred_fallthru
      _
    %p280 = scmp.le.s32.totalorder 1, %s14
    %p281 = scmp.lt.s32.totalorder %s14, 3
    %p282 = pnand %p280, %p281
    %p283 = pneg %p282
    // Predicated region
    $region49: #{global_context_block.2} parent=5 // pred_check
      _
    $region50: #{global_context_block.2} parent=5 // pred_check_branch
      %285 = sbr.rel (%p282) target = $region52
    $region51: #{global_context_block.2} parent=5 // pred_region
      %s286 = ssub.s32 %s14, 1
      %s287 = smul.u32 2, %s24
      %p288 = scmp.lt.s32.totalorder %s23, 1
      %s289 = scalar_select %p288, %s23, 1
      %p290 = scmp.lt.s32.totalorder %s287, 1
      %s291 = scalar_select %p290, %s287, 1
      %s292 = smul.addr %s289, 4
      %s293 = sadd.s32 %s291, %s292
      %s294 = smul.addr %s293, 8
      %s295 = scalar_lea.vmem %s0, %s294
      %p296 = pneg %p54
      %p297 = pneg %p51
      %p298 = pneg %p75
      %p299 = pneg %p72
      %p300 = pneg %p96
      %p301 = pneg %p93
      %p302 = pneg %p117
      %p303 = pneg %p114
      %p304 = pneg %p138
      %p305 = pneg %p135
      %p306 = pneg %p159
      %p307 = pneg %p156
      %p308 = pneg %p180
      %p309 = pneg %p177
      %p310 = pneg %p201
      %p311 = pneg %p198
      %p312 = pneg %p227
      %p313 = pneg %p224
      %p314 = scmp.lt.s32.totalorder %s23, 1
      %s315 = scalar_select %p314, %s23, 1
      %s316 = smul.addr %s315, 2
      %s317 = smul.addr %s316, 8
      %s318 = scalar_lea.vmem %s8, %s317
      %s319 = smul.u32 2, %s24
      %p320 = scmp.lt.s32.totalorder %s23, 1
      %s321 = scalar_select %p320, %s23, 1
      %p322 = scmp.lt.s32.totalorder %s319, 1
      %s323 = scalar_select %p322, %s319, 1
      %s324 = smul.addr %s321, 4
      %s325 = sadd.s32 %s323, %s324
      %s326 = smul.addr %s325, 8
      %s327 = scalar_lea.vmem %s0, %s326
      %s328 = smul.u32 2, %s24
      %p329 = scmp.lt.s32.totalorder %s23, 1
      %s330 = scalar_select %p329, %s23, 1
      %s331 = smul.addr %s330, 2
      %s332 = smul.addr %s331, 8
      %s333 = scalar_lea.vmem %s8, %s332
      %p334 = scmp.eq.s32.totalorder %s24, 0
      // Predicated region
      $region53: #{global_context_block.2} parent=51 // pred_check
        %p335 = pneg %p334
      $region54: #{global_context_block.2} parent=51 // pred_check_branch
        %337 = sbr.rel (%p335) target = $region56
      $region55: #{global_context_block.2} parent=51 // pred_region
        %vm338 = vcmask 0
        %339 = vst.msk [vmem:[#allocation2] sm:$0x1] %vm338, -inf
        %340 = vst.msk [vmem:[#allocation3] sm:$0x1] %vm338, 0.0
        %vm341 = vcmask 7168
        %342 = vst.msk [vmem:[#allocation4] sm:$0xff] %vm341, 0.0
        %343 = vst.msk [vmem:[#allocation4 + $0x8] sm:$0xff] %vm341, 0.0
      $region56: #{global_context_block.2} parent=51 // pred_fallthru
        _
      %v344 = vld [vmem:[%s327] sm:$0xff]
      %v345 = vld [vmem:[%s327 + $0x8] sm:$0xff]
      %v346 = vld [vmem:[%s327 + $0x10] sm:$0xff]
      %v347 = vld [vmem:[%s327 + $0x18] sm:$0xff]
      %v348 = vld [vmem:[%s1] sm:$0xff]
      %v349 = vld [vmem:[%s1 + $0x8] sm:$0xff]
      %351 = vset.pattern.permute.xlu0 0
      %352 = vperm.xlu0 %351, %v348
      %v353 = vpop.permute.xlu0 %352
      %356 = vset.pattern.permute.xlu0 0
      %357 = vperm.xlu0 %356, %v349
      %v358 = vpop.permute.xlu0 %357
      %v360 = vmul.f32 %v344, %v353
      %v361 = vmul.f32 %v345, %v353
      %v362 = vmul.f32 %v346, %v358
      %v363 = vmul.f32 %v347, %v358
      %v364 = vadd.f32 %v360, %v362
      %v365 = vrot.slane %v364, 4
      %v366 = vadd.f32 %v364, %v365
      %v367 = vrot.slane %v366, 2
      %v368 = vadd.f32 %v366, %v367
      %v369 = vrot.slane %v368, 1
      %v370 = vadd.f32 %v368, %v369
      %v371 = vadd.f32 %v361, %v363
      %v372 = vrot.slane %v371, 4
      %v373 = vadd.f32 %v371, %v372
      %v374 = vrot.slane %v373, 2
      %v375 = vadd.f32 %v373, %v374
      %v376 = vrot.slane %v375, 1
      %v377 = vadd.f32 %v375, %v376
      %v378 = vld [vmem:[#allocation2] sm:$0x1]
      %v379 = vmax.f32 %v370, %v377
      %380 = vmax.xlane.f32.xlu0 %v379
      %v381 = vpop.xlane.xlu0 %380
      %v382 = vmax.f32 %v378, %v381
      %v383 = vsub.f32 %v378, %v382
      %v384 = vmul.f32 %v383, 1.442695
      %v385 = vpow.pop %v384
      %387 = vset.pattern.permute.xlu0 0
      %388 = vperm.xlu0 %387, %v382
      %v389 = vpop.permute.xlu0 %388
      %v391 = vlaneseq
      %v392 = vshrl.u32 %v391, 7
      %v393 = vsub.s32 0, %v392
      %v394 = vrot.slane %v389, %v393
      %v395 = vsub.f32 %v370, %v394
      %v396 = vsub.f32 %v377, %v394
      %v397 = vmul.f32 %v395, 1.442695
      %v398 = vpow.pop %v397
      %v399 = vmul.f32 %v396, 1.442695
      %v400 = vpow.pop %v399
      %v401 = vmul.f32 %v344, %v398
      %v402 = vmul.f32 %v345, %v400
      %v403 = vmul.f32 %v346, %v398
      %v404 = vmul.f32 %v347, %v400
      %v405 = vld [vmem:[#allocation3] sm:$0x1]
      %v406 = vmul.f32 %v385, %v405
      %v407 = vadd.f32 %v398, %v400
      %408 = vadd.xlane.f32.xlu0 %v407
      %v409 = vpop.xlane.xlu0 %408
      %v410 = vadd.f32 %v406, %v409
      %vm411 = vcmask 0
      %412 = vst.msk [vmem:[#allocation3] sm:$0x1] %vm411, %v410
      %v413 = vld [vmem:[#allocation4] sm:$0xff]
      %v414 = vld [vmem:[#allocation4 + $0x8] sm:$0xff]
      %v416 = vlaneseq
      %v417 = vshrl.u32 %v416, 7
      %v418 = vsub.s32 0, %v417
      %v419 = vrot.slane %v385, %v418
      %v421 = vmul.f32 %v419, %v413
      %v422 = vmul.f32 %v419, %v414
      %v423 = vadd.f32 %v401, %v402
      %424 = vadd.xlane.f32.xlu0 %v423
      %v425 = vpop.xlane.xlu0 %424
      %v426 = vadd.f32 %v403, %v404
      %427 = vadd.xlane.f32.xlu0 %v426
      %v428 = vpop.xlane.xlu0 %427
      %v429 = vadd.f32 %v421, %v425
      %v430 = vadd.f32 %v422, %v428
      %vm431 = vcmask 7168
      %432 = vst.msk [vmem:[#allocation4] sm:$0xff] %vm431, %v429
      %433 = vst.msk [vmem:[#allocation4 + $0x8] sm:$0xff] %vm431, %v430
      %434 = vst.msk [vmem:[#allocation2] sm:$0x1] %vm411, %v382
      // Predicated region
      $region57: #{global_context_block.2} parent=51 // pred_check
        %p435 = pneg %p334
      $region58: #{global_context_block.2} parent=51 // pred_check_branch
        %437 = sbr.rel (%p435) target = $region60
      $region59: #{global_context_block.2} parent=51 // pred_region
        %v438 = vld [vmem:[#allocation4] sm:$0xff]
        %v439 = vld [vmem:[#allocation4 + $0x8] sm:$0xff]
        %v440 = vld [vmem:[#allocation3] sm:$0x1]
        %v441 = vrcp.pop %v440
        %v443 = vlaneseq
        %v444 = vshrl.u32 %v443, 7
        %v445 = vsub.s32 0, %v444
        %v446 = vrot.slane %v441, %v445
        %v448 = vmul.f32 %v438, %v446
        %v449 = vmul.f32 %v439, %v446
        %v450 = vld [vmem:[%s2] sm:$0xf]
        %v451 = vld [vmem:[%s3] sm:$0xf]
        %vm452 = vcmask 130048
        %v454 = vsel %vm452, %v450, 0
        %456 = vmatprep.subr.mxu0 0.0
        %457 = vmatpush1.msra.mxu0 %v448
        %458 = vmatprep.subr.mxu0 0.0
        %459 = vmatpush1.msra.mxu0 %v449
        %460 = vmatprep.subr.mxu0 0.0
        %461 = vmatpush1.msra.mxu0 0.0
        %462 = vmatprep.subr.mxu0 0.0
        %463 = vmatpush1.msra.mxu0 0.0
        %464 = vmatprep.subr.mxu0 0.0
        %465 = vmatpush1.msra.mxu0 0.0
        %466 = vmatprep.subr.mxu0 0.0
        %467 = vmatpush1.msra.mxu0 0.0
        %468 = vmatprep.subr.mxu0 0.0
        %469 = vmatpush1.msra.mxu0 0.0
        %470 = vmatprep.subr.mxu0 0.0
        %471 = vmatpush1.msra.mxu0 0.0
        %472 = vmatprep.subr.mxu0 0.0
        %473 = vmatpush1.msra.mxu0 0.0
        %474 = vmatprep.subr.mxu0 0.0
        %475 = vmatpush1.msra.mxu0 0.0
        %476 = vmatprep.subr.mxu0 0.0
        %477 = vmatpush1.msra.mxu0 0.0
        %478 = vmatprep.subr.mxu0 0.0
        %479 = vmatpush1.msra.mxu0 0.0
        %480 = vmatprep.subr.mxu0 0.0
        %481 = vmatpush1.msra.mxu0 0.0
        %482 = vmatprep.subr.mxu0 0.0
        %483 = vmatpush1.msra.mxu0 0.0
        %484 = vmatprep.subr.mxu0 0.0
        %485 = vmatpush1.msra.mxu0 0.0
        %486 = vmatprep.subr.mxu0 0.0
        %487 = vmatpush1.msra.mxu0 0.0
        %488 = vmatprep.subr.mxu0 0.0
        %489 = vmatpush1.msra.mxu0 0.0
        %490 = vmatprep.subr.mxu0 0.0
        %491 = vmatpush1.msra.mxu0 0.0
        %492 = vmatprep.subr.mxu0 0.0
        %493 = vmatpush1.msra.mxu0 0.0
        %494 = vmatprep.subr.mxu0 0.0
        %495 = vmatpush1.msra.mxu0 0.0
        %496 = vmatprep.subr.mxu0 0.0
        %497 = vmatpush1.msra.mxu0 0.0
        %498 = vmatprep.subr.mxu0 0.0
        %499 = vmatpush1.msra.mxu0 0.0
        %500 = vmatprep.subr.mxu0 0.0
        %501 = vmatpush1.msra.mxu0 0.0
        %502 = vmatprep.subr.mxu0 0.0
        %503 = vmatpush1.msra.mxu0 0.0
        %504 = vmatprep.subr.mxu0 0.0
        %505 = vmatpush1.msra.mxu0 0.0
        %506 = vmatprep.subr.mxu0 0.0
        %507 = vmatpush1.msra.mxu0 0.0
        %508 = vmatprep.subr.mxu0 0.0
        %509 = vmatpush1.msra.mxu0 0.0
        %510 = vmatprep.subr.mxu0 0.0
        %511 = vmatpush1.msra.mxu0 0.0
        %512 = vmatprep.subr.mxu0 0.0
        %513 = vmatpush1.msra.mxu0 0.0
        %514 = vmatprep.subr.mxu0 0.0
        %515 = vmatpush1.msra.mxu0 0.0
        %516 = vmatprep.subr.mxu0 0.0
        %517 = vmatpush1.msra.mxu0 0.0
        %518 = vmatprep.subr.mxu0 0.0
        %519 = vmatpush1.msra.mxu0 0.0
        %520 = vmatprep.mubr.f32.mxu0 0.0
        %521 = vmatmul.mubr.f32.gmra.mrb[0].mxu0 %v454
        %v522 = vpop.f32.mrb[0].mxu0
        %v523 = vadd.f32 %v451, %v522
        %v524 = vpop.f32.mrb[0].mxu0
        %525 = vdwg.mxu0
        %vm526 = vcmask 3072
        %v527 = vsel %vm526, %v523, 0.0
        %528 = vadd.xlane.f32.xlu0 %v527
        %v529 = vpop.xlane.xlu0 %528
        %v530 = vrot.slane %v529, 4
        %v531 = vadd.f32 %v529, %v530
        %v532 = vrot.slane %v531, 2
        %v533 = vadd.f32 %v531, %v532
        %v534 = vrot.slane %v533, 1
        %v535 = vadd.f32 %v533, %v534
        %s536 = vtos %v535
        %v537 = vrcp.pop 4.0
        %s538 = vtos %v537
        %s539 = smul.f32 %s536, %s538
        %v540 = vstv %s539
        %v541 = vsub.f32 %v523, %v540
        %v542 = vmul.f32 %v541, %v541
        %v543 = vsel %vm526, %v542, 0.0
        %544 = vadd.xlane.f32.xlu0 %v543
        %v545 = vpop.xlane.xlu0 %544
        %v546 = vrot.slane %v545, 4
        %v547 = vadd.f32 %v545, %v546
        %v548 = vrot.slane %v547, 2
        %v549 = vadd.f32 %v547, %v548
        %v550 = vrot.slane %v549, 1
        %v551 = vadd.f32 %v549, %v550
        %s552 = vtos %v551
        %v553 = vrcp.pop 4.0
        %s554 = vtos %v553
        %s555 = smul.f32 %s552, %s554
        %s556 = sadd.f32 %s555, 1e-05
        %v557 = vstv %s556
        %v558 = vrsqrt.pop %v557
        %s559 = vtos %v558
        %v560 = vstv %s559
        %v561 = vmul.f32 %v541, %v560
        %v562 = vld [vmem:[%s4] sm:$0xf]
        %v563 = vmul.f32 %v561, %v562
        %v564 = vld [vmem:[%s5] sm:$0xf]
        %v565 = vadd.f32 %v563, %v564
        %v566 = vmax.f32 %v565, 0.0
        %v567 = vld [vmem:[%s6] sm:$0xff]
        %v568 = vld [vmem:[%s6 + $0x8] sm:$0xff]
        %v569 = vld [vmem:[%s7] sm:$0xff]
        %v570 = vld [vmem:[%s7 + $0x8] sm:$0xff]
        %vm571 = vcmask 31744
        %v573 = vsel %vm571, %v567, 0
        %v576 = vsel %vm571, %v568, 0
        %vm578 = vcmask 1043456
        %v580 = vsel %vm578, %v566, 0
        %582 = vmatprep.subr.mxu0 0.0
        %583 = vmatpush1.msra.mxu0 %v580
        %584 = vmatprep.subr.mxu0 0.0
        %585 = vmatpush1.msra.mxu0 0.0
        %586 = vmatprep.subr.mxu0 0.0
        %587 = vmatpush1.msra.mxu0 0.0
        %588 = vmatprep.subr.mxu0 0.0
        %589 = vmatpush1.msra.mxu0 0.0
        %590 = vmatprep.subr.mxu0 0.0
        %591 = vmatpush1.msra.mxu0 0.0
        %592 = vmatprep.subr.mxu0 0.0
        %593 = vmatpush1.msra.mxu0 0.0
        %594 = vmatprep.subr.mxu0 0.0
        %595 = vmatpush1.msra.mxu0 0.0
        %596 = vmatprep.subr.mxu0 0.0
        %597 = vmatpush1.msra.mxu0 0.0
        %598 = vmatprep.subr.mxu0 0.0
        %599 = vmatpush1.msra.mxu0 0.0
        %600 = vmatprep.subr.mxu0 0.0
        %601 = vmatpush1.msra.mxu0 0.0
        %602 = vmatprep.subr.mxu0 0.0
        %603 = vmatpush1.msra.mxu0 0.0
        %604 = vmatprep.subr.mxu0 0.0
        %605 = vmatpush1.msra.mxu0 0.0
        %606 = vmatprep.subr.mxu0 0.0
        %607 = vmatpush1.msra.mxu0 0.0
        %608 = vmatprep.subr.mxu0 0.0
        %609 = vmatpush1.msra.mxu0 0.0
        %610 = vmatprep.subr.mxu0 0.0
        %611 = vmatpush1.msra.mxu0 0.0
        %612 = vmatprep.subr.mxu0 0.0
        %613 = vmatpush1.msra.mxu0 0.0
        %614 = vmatprep.subr.mxu0 0.0
        %615 = vmatpush1.msra.mxu0 0.0
        %616 = vmatprep.subr.mxu0 0.0
        %617 = vmatpush1.msra.mxu0 0.0
        %618 = vmatprep.subr.mxu0 0.0
        %619 = vmatpush1.msra.mxu0 0.0
        %620 = vmatprep.subr.mxu0 0.0
        %621 = vmatpush1.msra.mxu0 0.0
        %622 = vmatprep.subr.mxu0 0.0
        %623 = vmatpush1.msra.mxu0 0.0
        %624 = vmatprep.subr.mxu0 0.0
        %625 = vmatpush1.msra.mxu0 0.0
        %626 = vmatprep.subr.mxu0 0.0
        %627 = vmatpush1.msra.mxu0 0.0
        %628 = vmatprep.subr.mxu0 0.0
        %629 = vmatpush1.msra.mxu0 0.0
        %630 = vmatprep.subr.mxu0 0.0
        %631 = vmatpush1.msra.mxu0 0.0
        %632 = vmatprep.subr.mxu0 0.0
        %633 = vmatpush1.msra.mxu0 0.0
        %634 = vmatprep.subr.mxu0 0.0
        %635 = vmatpush1.msra.mxu0 0.0
        %636 = vmatprep.subr.mxu0 0.0
        %637 = vmatpush1.msra.mxu0 0.0
        %638 = vmatprep.subr.mxu0 0.0
        %639 = vmatpush1.msra.mxu0 0.0
        %640 = vmatprep.subr.mxu0 0.0
        %641 = vmatpush1.msra.mxu0 0.0
        %642 = vmatprep.subr.mxu0 0.0
        %643 = vmatpush1.msra.mxu0 0.0
        %644 = vmatprep.subr.mxu0 0.0
        %645 = vmatpush1.msra.mxu0 0.0
        %646 = vmatprep.mubr.f32.mxu0 0.0
        %647 = vmatmul.mubr.f32.gmra.mrb[0].mxu0 %v573
        %v648 = vpop.f32.mrb[0].mxu0
        %v649 = vadd.f32 %v569, %v648
        %v650 = vpop.f32.mrb[0].mxu0
        %651 = vmatprep.mubr.f32.mxu0 0.0
        %652 = vmatmul.mubr.f32.gmra.mrb[0].mxu0 %v576
        %v653 = vpop.f32.mrb[0].mxu0
        %v654 = vadd.f32 %v570, %v653
        %v655 = vpop.f32.mrb[0].mxu0
        %656 = vdwg.mxu0
        %657 = vst.msk [vmem:[%s333] sm:$0xff] %vm431, %v649
        %658 = vst.msk [vmem:[%s333 + $0x8] sm:$0xff] %vm431, %v654
      $region60: #{global_context_block.2} parent=51 // pred_fallthru
        _
      %p659 = scmp.lt.s32.totalorder %s23, 1
      %s660 = scalar_select %p659, %s23, 1
      %s661 = smul.addr %s660, 2
      %s662 = smul.addr %s661, 8
      %s663 = scalar_lea.vmem %s8, %s662
      // Predicated region
      $region61: #{global_context_block.2} parent=51 // pred_check
        %p664 = pneg %p224
      $region62: #{global_context_block.2} parent=51 // pred_check_branch
        %666 = sbr.rel (%p664) target = $region64
      $region63: #{global_context_block.2} parent=51 // pred_region
        _
      $region64: #{global_context_block.2} parent=51 // pred_fallthru
        _
    $region52: #{global_context_block.2} parent=5 // pred_fallthru
      _
    %p667 = scmp.le.s32.totalorder 2, %s14
    // Predicated region
    $region65: #{global_context_block.2} parent=5 // pred_check
      %p668 = pneg %p667
    $region66: #{global_context_block.2} parent=5 // pred_check_branch
      %670 = sbr.rel (%p668) target = $region68
    $region67: #{global_context_block.2} parent=5 // pred_region
      %s671 = ssub.s32 %s14, 2
      // Predicated region
      $region69: #{global_context_block.2} parent=67 // pred_check
        %p672 = pneg %p230
      $region70: #{global_context_block.2} parent=67 // pred_check_branch
        %674 = sbr.rel (%p672) target = $region72
      $region71: #{global_context_block.2} parent=67 // pred_region
        %p675 = scmp.lt.s32.totalorder %s25, 1
        %s676 = scalar_select %p675, %s25, 1
        %s677 = smul.addr %s676, 2
        %s678 = smul.addr %s677, 8
        %s679 = scalar_lea.vmem %s8, %s678
      $region72: #{global_context_block.2} parent=67 // pred_fallthru
        _
    $region68: #{global_context_block.2} parent=5 // pred_fallthru
      _
  $region6: #{global_context_block.2} parent=0 // loop_footer
    %s18 = sadd.s32 1, %s14
  $region7: #{global_context_block.2} parent=0 // loop_footer_branch
    %13 = sbr.rel target = $region3
  $region8: #{global_context_block.2} parent=0 // loop_exit
    _

</llo_original>
